<compile_context>
chip_gen: v7x
topology: tpu7x:2x2x1
jax: 0.10.0
libtpu: 0.0.40
codegen_flags: <defaults>
</compile_context>

<pallas_src>
import jax
import jax.numpy as jnp
from jax.experimental import pallas as pl
from jax.experimental.pallas import tpu as pltpu

# Buffers from BaseNet.__init__ (deterministic, defined in-module) — baked in
# as compile-time Python scalars.
MEAN_T = (-0.03, -0.088, -0.188)
STD_T = (0.458, 0.448, 0.45)
INV_STD_T = tuple(1.0 / s for s in STD_T)
EPS = 1e-10  # eps used by lpips normalize_activation


# ---------------------------------------------------------------------------
# Kernels
# ---------------------------------------------------------------------------
def _fused_zscore_normalize_kernel(x_ref, o_ref):
    """x_ref/o_ref: (N, 3, S_t, 128) f32 block.

    Per-channel affine with scalar literals, then the per-pixel channel-L2
    normalization used on every collected activation.  Channel is a leading
    dim, so each per-channel store writes a full (S_t, 128) tile (unmasked).
    """
    x = x_ref[...]                                        # (N, 3, S_t, 128)
    z0 = (x[:, 0] - MEAN_T[0]) * INV_STD_T[0]             # (N, S_t, 128)
    z1 = (x[:, 1] - MEAN_T[1]) * INV_STD_T[1]
    z2 = (x[:, 2] - MEAN_T[2]) * INV_STD_T[2]
    norm = jnp.sqrt(z0 * z0 + z1 * z1 + z2 * z2) + EPS    # (N, S_t, 128)
    inv_norm = pl.reciprocal(norm, approx=False)          # exact: keeps 1e-5 tol
    o_ref[:, 0] = z0 * inv_norm
    o_ref[:, 1] = z1 * inv_norm
    o_ref[:, 2] = z2 * inv_norm


def _z_score_kernel(x_ref, o_ref):
    """x_ref/o_ref: (N, 3, S_t, 128). Standalone z-score (BaseNet.z_score)."""
    x = x_ref[...]
    o_ref[:, 0] = (x[:, 0] - MEAN_T[0]) * INV_STD_T[0]
    o_ref[:, 1] = (x[:, 1] - MEAN_T[1]) * INV_STD_T[1]
    o_ref[:, 2] = (x[:, 2] - MEAN_T[2]) * INV_STD_T[2]


def _normalize_activation_kernel(x_ref, o_ref):
    """x_ref/o_ref: (1, C, S_t, 128). Channel-L2 normalization (any C).

    The channel reduction runs over a leading dim (one VPU add per input
    element, no cross-lane/XLU work); stores are full-tile and unmasked.
    """
    x = x_ref[...]                                         # (1, C, S_t, 128)
    sumsq = jnp.sum(x * x, axis=1, keepdims=True)          # (1, 1, S_t, 128)
    inv_norm = pl.reciprocal(jnp.sqrt(sumsq) + EPS, approx=False)
    o_ref[...] = x * inv_norm


# ---------------------------------------------------------------------------
# Tiling helpers
# ---------------------------------------------------------------------------
def _round_up(x, m):
    return (x + m - 1) // m * m


def _plan_spatial_tiles(hw, rows, *, block_budget=2 * 1024 * 1024, min_steps=4):
    """Plan the (S, 128) spatial tiling for a block of shape (rows, S_t, 128).

    Returns (hwp, s_t) where hwp is the (possibly padded) spatial extent and
    s_t the sublane tile along S = hwp // 128.

    Policy (per review):
      * block footprint rows * S_t * 128 * 4 bytes <= block_budget (~2 MiB),
        so the double-buffered in+out footprint (~4x) stays inside v5e's
        16 MiB scoped-VMEM default and v7x's 32 MiB scoped / 64 MiB physical.
      * prefer the LARGEST tile that still yields >= min_steps grid steps
        (DMA/compute overlap + work for both v7x TensorCores) without
        shrinking blocks so far that the ~0.35 us/step overhead dominates.
      * S_t is a multiple of 8 dividing S (no sublane padding) or S itself
        (full-extent block, no alignment constraint); footprint accounting
        uses the sublane-padded size in the full-extent case.
    """
    hwp = _round_up(hw, 128)

    def pick(S):
        bytes_per_s_row = rows * 128 * 4
        cands = [d for d in range(8, S + 1, 8) if S % d == 0]
        if S not in cands:
            # Full-extent block: legal regardless of alignment, but VMEM pads
            # the sublane dim up to a multiple of 8 -- account for that.
            if _round_up(S, 8) * bytes_per_s_row <= block_budget:
                cands.append(S)
        if not cands:
            return None
        fitting = [c for c in cands if c * bytes_per_s_row <= block_budget]
        if not fitting:
            fitting = [min(cands)]  # best effort: smallest legal block
        good = [c for c in fitting if S // c >= min_steps]
        if good:
            return max(good)
        ok = [c for c in fitting if S // c >= 2]
        if ok:
            return max(ok)
        return max(fitting)

    s_t = pick(hwp // 128)
    if s_t is None:
        # S has no multiple-of-8 divisor and a full-S block would blow the
        # budget: pad the spatial axis so S becomes a multiple of 8.
        hwp = _round_up(hw, 8 * 128)
        s_t = pick(hwp // 128)
    return hwp, s_t


def _to_lane_major(x3, hwp):
    """(N, C, HW) -> (N, C, S, 128), zero-padding the spatial axis to hwp."""
    n, c, hw = x3.shape
    if hwp != hw:
        # TODO(synk): the pad/slice pair costs one extra pass on non-aligned
        #             spatial extents; a channel-last block would avoid it for
        #             deep layers once the backbone fixes the activation layout.
        x3 = jnp.pad(x3, ((0, 0), (0, 0), (0, hwp - hw)))
    return x3.reshape(n, c, hwp // 128, 128)


# ---------------------------------------------------------------------------
# Wrappers
# ---------------------------------------------------------------------------
def basenet_forward(x):
    """Concrete part of BaseNet.forward: z-score + the channel-L2
    normalization the forward loop applies to each collected feature, fused
    into one HBM pass.  NOTE: in the real module the normalization is applied
    to conv activations from the (subclass-only) backbone, so this output is a
    placeholder for that path, not a real LPIPS feature (see TODO above)."""
    N, C, H, W = x.shape
    assert C == 3, "BaseNet mean/std buffers are 3-channel"
    HW = H * W
    hwp, s_t = _plan_spatial_tiles(HW, rows=N * C)
    S = hwp // 128
    x4 = _to_lane_major(x.reshape(N, C, HW), hwp)
    out = pl.pallas_call(
        _fused_zscore_normalize_kernel,
        out_shape=jax.ShapeDtypeStruct((N, C, S, 128), x.dtype),
        grid=(S // s_t,),
        in_specs=[pl.BlockSpec((N, C, s_t, 128), lambda s: (0, 0, s, 0))],
        out_specs=pl.BlockSpec((N, C, s_t, 128), lambda s: (0, 0, s, 0)),
        compiler_params=pltpu.CompilerParams(
            dimension_semantics=("parallel",)),
    )(x4)
    out = out.reshape(N, C, hwp)[:, :, :HW].reshape(N, C, H, W)
    return [out]


def z_score(x):
    """x: (N, 3, H, W) f32. Returns (x - mean) / std (BaseNet.z_score)."""
    N, C, H, W = x.shape
    assert C == 3
    HW = H * W
    hwp, s_t = _plan_spatial_tiles(HW, rows=N * C)
    S = hwp // 128
    x4 = _to_lane_major(x.reshape(N, C, HW), hwp)
    out = pl.pallas_call(
        _z_score_kernel,
        out_shape=jax.ShapeDtypeStruct((N, C, S, 128), x.dtype),
        grid=(S // s_t,),
        in_specs=[pl.BlockSpec((N, C, s_t, 128), lambda s: (0, 0, s, 0))],
        out_specs=pl.BlockSpec((N, C, s_t, 128), lambda s: (0, 0, s, 0)),
        compiler_params=pltpu.CompilerParams(
            dimension_semantics=("parallel",)),
    )(x4)
    return out.reshape(N, C, hwp)[:, :, :HW].reshape(N, C, H, W)


def normalize_activation(x):
    """x: (N, C, H, W). Returns x / (sqrt(sum_c x^2) + eps), as in LPIPS.
    Tiled over batch and the flattened spatial axis (per-pixel reduction, so
    no cross-tile dependency); the full channel extent lives inside each block
    on a leading dim."""
    N, C, H, W = x.shape
    HW = H * W
    hwp, s_t = _plan_spatial_tiles(HW, rows=C)
    S = hwp // 128
    x4 = _to_lane_major(x.reshape(N, C, HW), hwp)
    out = pl.pallas_call(
        _normalize_activation_kernel,
        out_shape=jax.ShapeDtypeStruct((N, C, S, 128), x.dtype),
        grid=(N, S // s_t),
        in_specs=[pl.BlockSpec((1, C, s_t, 128), lambda n, s: (n, 0, s, 0))],
        out_specs=pl.BlockSpec((1, C, s_t, 128), lambda n, s: (n, 0, s, 0)),
        compiler_params=pltpu.CompilerParams(
            dimension_semantics=("parallel", "parallel")),
    )(x4)
    return out.reshape(N, C, hwp)[:, :, :HW].reshape(N, C, H, W)


# ---------------------------------------------------------------------------
# Self-test
# ---------------------------------------------------------------------------
if __name__ == "__main__":
    key = jax.random.PRNGKey(0)
    # batch=2, channels=3 (forced by the 3-channel mean/std buffers), 16x16
    x = jax.random.normal(key, (2, 3, 16, 16), dtype=jnp.float32)

    mean4 = jnp.array(MEAN_T, jnp.float32).reshape(1, 3, 1, 1)
    std4 = jnp.array(STD_T, jnp.float32).reshape(1, 3, 1, 1)
    z_ref = (x - mean4) / std4
    norm_ref = z_ref / (
        jnp.sqrt(jnp.sum(z_ref * z_ref, axis=1, keepdims=True)) + EPS)

    # Fused forward placeholder path (z-score + channel-L2 normalize, 1 pass).
    outs = basenet_forward(x)
    outs = [jax.block_until_ready(o) for o in outs]
    assert outs[0].shape == (2, 3, 16, 16)
    assert jnp.allclose(outs[0], norm_ref, atol=1e-5, rtol=1e-5)

    # Standalone z_score (BaseNet.z_score).
    z_out = jax.block_until_ready(z_score(x))
    assert jnp.allclose(z_out, z_ref, atol=1e-5, rtol=1e-5)

    # Generic normalize_activation on a wider "activation" (C=8), aligned HW.
    act = jax.random.normal(jax.random.PRNGKey(1), (2, 8, 16, 16),
                            dtype=jnp.float32)
    act_ref = act / (
        jnp.sqrt(jnp.sum(act * act, axis=1, keepdims=True)) + EPS)
    act_out = jax.block_until_ready(normalize_activation(act))
    assert jnp.allclose(act_out, act_ref, atol=1e-5, rtol=1e-5)

    # Non-128-multiple spatial extent (14x14 -> 196): exercises the padded path.
    act2 = jax.random.normal(jax.random.PRNGKey(2), (2, 8, 14, 14),
                             dtype=jnp.float32)
    act2_ref = act2 / (
        jnp.sqrt(jnp.sum(act2 * act2, axis=1, keepdims=True)) + EPS)
    act2_out = jax.block_until_ready(normalize_activation(act2))
    assert jnp.allclose(act2_out, act2_ref, atol=1e-5, rtol=1e-5)

    print("KERNEL_OK")
</pallas_src>

<mosaic_0001>
module attributes {stable_mosaic.version = 11 : i64} {
  func.func @_fused_zscore_normalize_kernel(%arg0: i32, %arg1: memref<2x3x2x128xf32, #tpu.memory_space<vmem>>, %arg2: memref<2x3x2x128xf32, #tpu.memory_space<vmem>>) attributes {dimension_semantics = [#tpu.dimension_semantics<parallel>], iteration_bounds = array<i64: 1>, scalar_prefetch = 0 : i64, scratch_operands = 0 : i64, tpu.core_type = #tpu.core_type<tc>, window_params = [{transform_indices = @transform_0, window_bounds = array<i64: 2, 3, 2, 128>}, {transform_indices = @transform_1, window_bounds = array<i64: 2, 3, 2, 128>}]} {
    %c0 = arith.constant 0 : index
    %c0_0 = arith.constant 0 : index
    %c0_1 = arith.constant 0 : index
    %c0_2 = arith.constant 0 : index
    %0 = vector.load %arg1[%c0, %c0_0, %c0_1, %c0_2] : memref<2x3x2x128xf32, #tpu.memory_space<vmem>>, vector<2x3x2x128xf32>
    %1 = vector.extract_strided_slice %0 {offsets = [0, 0, 0, 0], sizes = [2, 1, 2, 128], strides = [1, 1, 1, 1]} : vector<2x3x2x128xf32> to vector<2x1x2x128xf32>
    %2 = vector.shape_cast %1 : vector<2x1x2x128xf32> to vector<2x2x128xf32>
    %cst = arith.constant -3.000000e-02 : f32
    %3 = vector.broadcast %cst : f32 to vector<2x2x128xf32>
    %4 = arith.subf %2, %3 : vector<2x2x128xf32>
    %cst_3 = arith.constant 2.18340611 : f32
    %5 = vector.broadcast %cst_3 : f32 to vector<2x2x128xf32>
    %6 = arith.mulf %4, %5 : vector<2x2x128xf32>
    %7 = vector.extract_strided_slice %0 {offsets = [0, 1, 0, 0], sizes = [2, 1, 2, 128], strides = [1, 1, 1, 1]} : vector<2x3x2x128xf32> to vector<2x1x2x128xf32>
    %8 = vector.shape_cast %7 : vector<2x1x2x128xf32> to vector<2x2x128xf32>
    %cst_4 = arith.constant -0.0879999995 : f32
    %9 = vector.broadcast %cst_4 : f32 to vector<2x2x128xf32>
    %10 = arith.subf %8, %9 : vector<2x2x128xf32>
    %cst_5 = arith.constant 2.23214293 : f32
    %11 = vector.broadcast %cst_5 : f32 to vector<2x2x128xf32>
    %12 = arith.mulf %10, %11 : vector<2x2x128xf32>
    %13 = vector.extract_strided_slice %0 {offsets = [0, 2, 0, 0], sizes = [2, 1, 2, 128], strides = [1, 1, 1, 1]} : vector<2x3x2x128xf32> to vector<2x1x2x128xf32>
    %14 = vector.shape_cast %13 : vector<2x1x2x128xf32> to vector<2x2x128xf32>
    %cst_6 = arith.constant -1.880000e-01 : f32
    %15 = vector.broadcast %cst_6 : f32 to vector<2x2x128xf32>
    %16 = arith.subf %14, %15 : vector<2x2x128xf32>
    %cst_7 = arith.constant 2.22222233 : f32
    %17 = vector.broadcast %cst_7 : f32 to vector<2x2x128xf32>
    %18 = arith.mulf %16, %17 : vector<2x2x128xf32>
    %19 = arith.mulf %6, %6 : vector<2x2x128xf32>
    %20 = arith.mulf %12, %12 : vector<2x2x128xf32>
    %21 = arith.addf %19, %20 : vector<2x2x128xf32>
    %22 = arith.mulf %18, %18 : vector<2x2x128xf32>
    %23 = arith.addf %21, %22 : vector<2x2x128xf32>
    %24 = math.sqrt %23 : vector<2x2x128xf32>
    %cst_8 = arith.constant 1.000000e-10 : f32
    %25 = vector.broadcast %cst_8 : f32 to vector<2x2x128xf32>
    %26 = arith.addf %24, %25 : vector<2x2x128xf32>
    %27 = tpu.reciprocal %26 : vector<2x2x128xf32> -> vector<2x2x128xf32>
    %28 = arith.mulf %6, %27 : vector<2x2x128xf32>
    %c0_9 = arith.constant 0 : index
    %c0_10 = arith.constant 0 : index
    %c0_11 = arith.constant 0 : index
    %c0_12 = arith.constant 0 : index
    %29 = vector.load %arg2[%c0_9, %c0_10, %c0_11, %c0_12] : memref<2x3x2x128xf32, #tpu.memory_space<vmem>>, vector<2x1x2x128xf32>
    %30 = vector.shape_cast %29 : vector<2x1x2x128xf32> to vector<2x2x128xf32>
    %31 = vector.shape_cast %28 : vector<2x2x128xf32> to vector<2x1x2x128xf32>
    tpu.vector_store %arg2[%c0_9, %c0_10, %c0_11, %c0_12], %31 {strides = array<i32>} : memref<2x3x2x128xf32, #tpu.memory_space<vmem>>, vector<2x1x2x128xf32>,
    %32 = arith.mulf %12, %27 : vector<2x2x128xf32>
    %c0_13 = arith.constant 0 : index
    %c1 = arith.constant 1 : index
    %c0_14 = arith.constant 0 : index
    %c0_15 = arith.constant 0 : index
    %33 = vector.load %arg2[%c0_13, %c1, %c0_14, %c0_15] : memref<2x3x2x128xf32, #tpu.memory_space<vmem>>, vector<2x1x2x128xf32>
    %34 = vector.shape_cast %33 : vector<2x1x2x128xf32> to vector<2x2x128xf32>
    %35 = vector.shape_cast %32 : vector<2x2x128xf32> to vector<2x1x2x128xf32>
    tpu.vector_store %arg2[%c0_13, %c1, %c0_14, %c0_15], %35 {strides = array<i32>} : memref<2x3x2x128xf32, #tpu.memory_space<vmem>>, vector<2x1x2x128xf32>,
    %36 = arith.mulf %18, %27 : vector<2x2x128xf32>
    %c0_16 = arith.constant 0 : index
    %c2 = arith.constant 2 : index
    %c0_17 = arith.constant 0 : index
    %c0_18 = arith.constant 0 : index
    %37 = vector.load %arg2[%c0_16, %c2, %c0_17, %c0_18] : memref<2x3x2x128xf32, #tpu.memory_space<vmem>>, vector<2x1x2x128xf32>
    %38 = vector.shape_cast %37 : vector<2x1x2x128xf32> to vector<2x2x128xf32>
    %39 = vector.shape_cast %36 : vector<2x2x128xf32> to vector<2x1x2x128xf32>
    tpu.vector_store %arg2[%c0_16, %c2, %c0_17, %c0_18], %39 {strides = array<i32>} : memref<2x3x2x128xf32, #tpu.memory_space<vmem>>, vector<2x1x2x128xf32>,
    return
  }
  func.func @transform_0(%arg0: i32) -> (i32, i32, i32, i32) {
    %c0_i32 = arith.constant 0 : i32
    %c0_i32_0 = arith.constant 0 : i32
    %c0_i32_1 = arith.constant 0 : i32
    %c0_i32_2 = arith.constant 0 : i32
    return %c0_i32, %c0_i32_0, %arg0, %c0_i32_1 : i32, i32, i32, i32
  }
  func.func @transform_1(%arg0: i32) -> (i32, i32, i32, i32) {
    %c0_i32 = arith.constant 0 : i32
    %c0_i32_0 = arith.constant 0 : i32
    %c0_i32_1 = arith.constant 0 : i32
    %c0_i32_2 = arith.constant 0 : i32
    return %c0_i32, %c0_i32_0, %arg0, %c0_i32_1 : i32, i32, i32, i32
  }
}

</mosaic_0001>

<llo_original>
// kernel: tpu_custom_call.1
$region0: #{tpu_custom_call.1}
  #allocation0 [shape = 'u32[]', space=smem, size = 0x4, offset = 0x4, fixed_abs, tag = 'smem constant byte address 0x4 - core index']
  #allocation1 [shape = 'u32[144,128]{1,0:T(1,128)}', space=vmem, size = 0x12000, scoped, tag = 'internal scratch']
  %s0 = inlined_call_operand.hbm [shape: f32[2,3,2,128], index: 0, kind: input, shape index: {}]
  %s1 = inlined_call_operand.hbm [shape: f32[2,3,2,128], index: 1, kind: output, shape index: {}]
  %s2 = sld [smem:[#allocation0]]
  $region18: #{tpu_custom_call.1} parent=0
    _
  %s4 = ssub.s32 1, %s2
  %s5 = scalar_select 0, %s4, %s2
  $region1: #{tpu_custom_call.1} parent=0
    #allocation2 [shape = 'u8[6144]{0}', space=vmem, size = 0x1800, scoped, tag = 'input window, operand 0, single buffered']
    #allocation3 [shape = 's32[1]{0}', space=sflag, size = 0x4, scoped, tag = 'scoped memory for tpu_custom_call.1']
    #allocation4 [shape = 's32[1]{0}', space=sflag, size = 0x4, scoped, tag = 'scoped memory for tpu_custom_call.1']
    #allocation5 [shape = 'u8[6144]{0}', space=vmem, size = 0x1800, scoped, tag = 'output window, operand 0, single buffered']
    %6 = vsyncpa [#allocation3], 0
    %7 = vsyncpa [#allocation4], 0
    // Predicated region
    $region2: #{tpu_custom_call.1} parent=1 // pred_check
      _
    $region3: #{tpu_custom_call.1} parent=1 // pred_check_branch
      %9 = sbr.rel (0) target = $region5
    $region4: #{tpu_custom_call.1} parent=1 // pred_region
      %s11 = ssub.s32 192, 192
      %12 = vsyncadd [#allocation3], %s11
      %s13 = sshll.u32 [#allocation2], 4
      %s14 = int_to_ptr.vmem [resolvable:$true] %s13
      %19 = dma.hbm_to_vmem [thread:$0]  %s0, 192, %s14, [#allocation3], 32, 32, 2
    $region5: #{tpu_custom_call.1} parent=1 // pred_fallthru
      _
    // Predicated region
    $region6: #{tpu_custom_call.1} parent=1 // pred_check
      _
    $region7: #{tpu_custom_call.1} parent=1 // pred_check_branch
      %21 = sbr.rel (0) target = $region9
    $region8: #{tpu_custom_call.1} parent=1 // pred_region
      %22 = dma.done [#allocation3], 192
    $region9: #{tpu_custom_call.1} parent=1 // pred_fallthru
      _
    %v23 = vld [vmem:[#allocation2] sm:$0x3]
    %v24 = vld [vmem:[#allocation2 + $0x2] sm:$0x3]
    %v25 = vld [vmem:[#allocation2 + $0x4] sm:$0x3]
    %v26 = vld [vmem:[#allocation2 + $0x6] sm:$0x3]
    %v27 = vld [vmem:[#allocation2 + $0x8] sm:$0x3]
    %v28 = vld [vmem:[#allocation2 + $0xa] sm:$0x3]
    %v29 = vsub.f32 %v23, -0.03
    %v30 = vsub.f32 %v26, -0.03
    %v31 = vmul.f32 %v29, 2.183406
    %v32 = vmul.f32 %v30, 2.183406
    %v33 = vsub.f32 %v24, -0.088
    %v34 = vsub.f32 %v27, -0.088
    %v35 = vmul.f32 %v33, 2.232143
    %v36 = vmul.f32 %v34, 2.232143
    %v37 = vsub.f32 %v25, -0.188
    %v38 = vsub.f32 %v28, -0.188
    %v39 = vmul.f32 %v37, 2.2222223
    %v40 = vmul.f32 %v38, 2.2222223
    %v41 = vmul.f32 %v31, %v31
    %v42 = vmul.f32 %v32, %v32
    %v43 = vmul.f32 %v35, %v35
    %v44 = vmul.f32 %v36, %v36
    %v45 = vadd.f32 %v41, %v43
    %v46 = vadd.f32 %v42, %v44
    %v47 = vmul.f32 %v39, %v39
    %v48 = vmul.f32 %v40, %v40
    %v49 = vadd.f32 %v45, %v47
    %v50 = vadd.f32 %v46, %v48
    %v51 = vrsqrt.pop %v49
    %v52 = vmul.f32 %v49, %v51
    %vm53 = vcmp.eq.f32.partialorder %v49, inf
    %v54 = vsel %vm53, %v49, %v52
    %vm55 = vcmp.eq.f32.partialorder %v49, 0.0
    %v56 = vand.u32 %v49, 2147483648
    %v57 = vsel %vm55, %v56, %v54
    %v58 = vrsqrt.pop %v50
    %v59 = vmul.f32 %v50, %v58
    %vm60 = vcmp.eq.f32.partialorder %v50, inf
    %v61 = vsel %vm60, %v50, %v59
    %vm62 = vcmp.eq.f32.partialorder %v50, 0.0
    %v63 = vand.u32 %v50, 2147483648
    %v64 = vsel %vm62, %v63, %v61
    %v65 = vadd.f32 %v57, 1e-10
    %v66 = vadd.f32 %v64, 1e-10
    %v67 = vrcp.pop %v65
    %v68 = vrcp.pop %v66
    %v69 = vmul.f32 %v31, %v67
    %v70 = vmul.f32 %v32, %v68
    %71 = vst [vmem:[#allocation5] sm:$0x3] %v69
    %72 = vst [vmem:[#allocation5 + $0x6] sm:$0x3] %v70
    %v73 = vmul.f32 %v35, %v67
    %v74 = vmul.f32 %v36, %v68
    %s75 = scalar_lea.vmem [#allocation5], 2
    %76 = vst [vmem:[%s75] sm:$0x3] %v73
    %77 = vst [vmem:[%s75 + $0x6] sm:$0x3] %v74
    %v78 = vmul.f32 %v39, %v67
    %v79 = vmul.f32 %v40, %v68
    %s80 = scalar_lea.vmem [#allocation5], 4
    %81 = vst [vmem:[%s80] sm:$0x3] %v78
    %82 = vst [vmem:[%s80 + $0x6] sm:$0x3] %v79
    // Predicated region
    $region10: #{tpu_custom_call.1} parent=1 // pred_check
      _
    $region11: #{tpu_custom_call.1} parent=1 // pred_check_branch
      %84 = sbr.rel (0) target = $region13
    $region12: #{tpu_custom_call.1} parent=1 // pred_region
      %s86 = ssub.s32 192, 192
      %87 = vsyncadd [#allocation4], %s86
      %s88 = sshll.u32 [#allocation5], 4
      %s89 = int_to_ptr.vmem [resolvable:$true] %s88
      %94 = dma.vmem_to_hbm [thread:$0]  %s89, 192, %s1, [#allocation4], 32, 32, 2
    $region13: #{tpu_custom_call.1} parent=1 // pred_fallthru
      _
    // Predicated region
    $region14: #{tpu_custom_call.1} parent=1 // pred_check
      _
    $region15: #{tpu_custom_call.1} parent=1 // pred_check_branch
      %96 = sbr.rel (0) target = $region17
    $region16: #{tpu_custom_call.1} parent=1 // pred_region
      %97 = dma.done [#allocation4], 192
    $region17: #{tpu_custom_call.1} parent=1 // pred_fallthru
      _
    %98 = vsyncpa [#allocation3], 1
    %99 = vsyncpa [#allocation4], 1

</llo_original>
